<compile_context>
chip_gen: v7x
topology: tpu7x:2x2x1
jax: 0.10.0
libtpu: 0.0.40
codegen_flags: <defaults>
</compile_context>

<pallas_src>
import functools

import numpy as np
import jax
import jax.numpy as jnp
from jax.experimental import pallas as pl
from jax.experimental.pallas import tpu as pltpu

# ----------------------------- config ---------------------------------------
N_POINTS = 128                   # batch of selected points
N_CLASSES = 8                    # number of instance classes (sdf channels)
SDF_SUPERVISION_WEIGHT = 1.0
INSTANCE_SEG_WEIGHT = 0.5


# ------------------------------ kernel ---------------------------------------
def _loss_kernel(slab_ref, out_ref, *, c, w_sdf, w_seg):
    # slab layout (rows): [ proxy_sdf^T (C) | network_sdf^T (C) | one_hot(gt)^T (C) ]
    s = slab_ref[...]                        # (3C, N)  single lane-dense load
    x = s[0:c, :]                            # select_proxy_sdf^T   (C, N)
    y = s[c:2 * c, :]                        # select_network_sdf^T (C, N)
    oh = s[2 * c:3 * c, :]                   # one_hot(select_gt_seg)^T (C, N)

    # distillation: F.mse_loss(x, y.detach()) -> mean over all N*C elements
    diff = x - y
    distillation = jnp.mean(diff * diff) * w_sdf

    # get_seg_loss2: target = v[arange(N), gt]; loss = relu(-(v - target)).mean()
    # gather replaced by masked sum over the class axis (sublanes).
    def seg_loss(v):
        target = jnp.sum(v * oh, axis=0, keepdims=True)      # (1, N)
        wrong = v - target                                    # (C, N)
        return jnp.mean(jnp.maximum(-wrong, 0.0))

    segmentation = (seg_loss(y) + seg_loss(x)) * w_seg

    out_ref[0] = distillation
    out_ref[1] = segmentation
    out_ref[2] = distillation + segmentation


# ------------------------------ wrapper ---------------------------------------
def point_transformation_loss(model_outputs,
                              sdf_supervision_weight=SDF_SUPERVISION_WEIGHT,
                              instance_seg_weight=INSTANCE_SEG_WEIGHT):
    x = model_outputs['select_proxy_sdf'].astype(jnp.float32)       # (N, C)
    y = model_outputs['select_network_sdf'].astype(jnp.float32)     # (N, C)
    z = model_outputs['select_gt_seg'].reshape(-1)                  # (N,) int
    n, c = x.shape

    one_hot = jax.nn.one_hot(z, c, dtype=jnp.float32)               # (N, C)
    # lane-dense slab: points on lanes (N=128), 3*C rows on sublanes -> 1 DMA
    slab = jnp.concatenate([x.T, y.T, one_hot.T], axis=0)           # (3C, N)

    out = pl.pallas_call(
        functools.partial(_loss_kernel, c=c,
                          w_sdf=float(sdf_supervision_weight),
                          w_seg=float(instance_seg_weight)),
        out_shape=jax.ShapeDtypeStruct((3,), jnp.float32),
        in_specs=[pl.BlockSpec(memory_space=pltpu.MemorySpace.VMEM)],
        out_specs=pl.BlockSpec(memory_space=pltpu.MemorySpace.SMEM),
    )(slab)

    return {'distillation_loss': out[0],
            'segmentation_loss': out[1],
            'transformation_total_loss': out[2]}


# ----------------------------- reference (numpy) ------------------------------
def reference_loss(model_outputs, sdf_supervision_weight, instance_seg_weight):
    x = np.asarray(model_outputs['select_proxy_sdf'], np.float64)
    y = np.asarray(model_outputs['select_network_sdf'], np.float64)
    z = np.asarray(model_outputs['select_gt_seg']).reshape(-1)

    distillation = np.mean((x - y) ** 2) * sdf_supervision_weight

    def get_seg_loss2(v, gt):
        target = v[np.arange(v.shape[0]), gt]
        wrong = v - target[:, None]
        return np.mean(np.maximum(-wrong, 0.0))

    segmentation = (get_seg_loss2(y, z) + get_seg_loss2(x, z)) * instance_seg_weight
    total = distillation + segmentation
    return {'distillation_loss': distillation,
            'segmentation_loss': segmentation,
            'transformation_total_loss': total}


# --------------------------------- main ---------------------------------------
if __name__ == "__main__":
    key = jax.random.PRNGKey(0)
    k0, k1, k2 = jax.random.split(key, 3)
    n, c = N_POINTS, N_CLASSES

    model_outputs = {
        'select_proxy_sdf': jax.random.normal(k0, (n, c), jnp.float32),
        'select_network_sdf': jax.random.normal(k1, (n, c), jnp.float32),
        'select_gt_seg': jax.random.randint(k2, (n,), 0, c, jnp.int32),
    }

    out = point_transformation_loss(model_outputs,
                                    SDF_SUPERVISION_WEIGHT,
                                    INSTANCE_SEG_WEIGHT)
    out = jax.tree_util.tree_map(jax.block_until_ready, out)

    ref = reference_loss(model_outputs, SDF_SUPERVISION_WEIGHT, INSTANCE_SEG_WEIGHT)
    for k in ('distillation_loss', 'segmentation_loss', 'transformation_total_loss'):
        np.testing.assert_allclose(np.float64(out[k]), ref[k], rtol=1e-4, atol=1e-5)

    print("KERNEL_OK")
</pallas_src>

<mosaic_0001>
module attributes {stable_mosaic.version = 11 : i64} {
  func.func @_loss_kernel(%arg0: memref<24x128xf32, #tpu.memory_space<vmem>>, %arg1: memref<3xf32, #tpu.memory_space<smem>>) attributes {dimension_semantics = [], scalar_prefetch = 0 : i64, scratch_operands = 0 : i64, tpu.core_type = #tpu.core_type<tc>} {
    %c0 = arith.constant 0 : index
    %c0_0 = arith.constant 0 : index
    %0 = vector.load %arg0[%c0, %c0_0] : memref<24x128xf32, #tpu.memory_space<vmem>>, vector<24x128xf32>
    %1 = vector.extract_strided_slice %0 {offsets = [0, 0], sizes = [8, 128], strides = [1, 1]} : vector<24x128xf32> to vector<8x128xf32>
    %2 = vector.extract_strided_slice %0 {offsets = [8, 0], sizes = [8, 128], strides = [1, 1]} : vector<24x128xf32> to vector<8x128xf32>
    %3 = vector.extract_strided_slice %0 {offsets = [16, 0], sizes = [8, 128], strides = [1, 1]} : vector<24x128xf32> to vector<8x128xf32>
    %4 = arith.subf %1, %2 : vector<8x128xf32>
    %5 = arith.mulf %4, %4 : vector<8x128xf32>
    %6 = vector.shape_cast %5 : vector<8x128xf32> to vector<1x8x128xf32>
    %cst = arith.constant dense<0.000000e+00> : vector<1xf32>
    %7 = vector.multi_reduction <add>, %6, %cst [1, 2] : vector<1x8x128xf32> to vector<1xf32>
    %8 = vector.shape_cast %7 : vector<1xf32> to vector<1x1x1xf32>
    %9 = vector.extract %8[0, 0, 0] : f32 from vector<1x1x1xf32>
    %cst_1 = arith.constant 1.024000e+03 : f32
    %10 = arith.divf %9, %cst_1 : f32
    %cst_2 = arith.constant 1.000000e+00 : f32
    %11 = arith.mulf %10, %cst_2 : f32
    %12 = arith.mulf %2, %3 : vector<8x128xf32>
    %cst_3 = arith.constant dense<0.000000e+00> : vector<128xf32>
    %13 = vector.multi_reduction <add>, %12, %cst_3 [0] : vector<8x128xf32> to vector<128xf32>
    %14 = vector.shape_cast %13 : vector<128xf32> to vector<1x128xf32>
    %15 = vector.broadcast %14 : vector<1x128xf32> to vector<8x128xf32>
    %16 = arith.subf %2, %15 : vector<8x128xf32>
    %cst_4 = arith.constant 0.000000e+00 : f32
    %17 = vector.broadcast %cst_4 : f32 to vector<8x128xf32>
    %18 = arith.subf %17, %16 : vector<8x128xf32>
    %cst_5 = arith.constant 0.000000e+00 : f32
    %19 = vector.broadcast %cst_5 : f32 to vector<8x128xf32>
    %20 = arith.maximumf %18, %19 : vector<8x128xf32>
    %21 = vector.shape_cast %20 : vector<8x128xf32> to vector<1x8x128xf32>
    %cst_6 = arith.constant dense<0.000000e+00> : vector<1xf32>
    %22 = vector.multi_reduction <add>, %21, %cst_6 [1, 2] : vector<1x8x128xf32> to vector<1xf32>
    %23 = vector.shape_cast %22 : vector<1xf32> to vector<1x1x1xf32>
    %24 = vector.extract %23[0, 0, 0] : f32 from vector<1x1x1xf32>
    %cst_7 = arith.constant 1.024000e+03 : f32
    %25 = arith.divf %24, %cst_7 : f32
    %26 = arith.mulf %1, %3 : vector<8x128xf32>
    %cst_8 = arith.constant dense<0.000000e+00> : vector<128xf32>
    %27 = vector.multi_reduction <add>, %26, %cst_8 [0] : vector<8x128xf32> to vector<128xf32>
    %28 = vector.shape_cast %27 : vector<128xf32> to vector<1x128xf32>
    %29 = vector.broadcast %28 : vector<1x128xf32> to vector<8x128xf32>
    %30 = arith.subf %1, %29 : vector<8x128xf32>
    %cst_9 = arith.constant 0.000000e+00 : f32
    %31 = vector.broadcast %cst_9 : f32 to vector<8x128xf32>
    %32 = arith.subf %31, %30 : vector<8x128xf32>
    %cst_10 = arith.constant 0.000000e+00 : f32
    %33 = vector.broadcast %cst_10 : f32 to vector<8x128xf32>
    %34 = arith.maximumf %32, %33 : vector<8x128xf32>
    %35 = vector.shape_cast %34 : vector<8x128xf32> to vector<1x8x128xf32>
    %cst_11 = arith.constant dense<0.000000e+00> : vector<1xf32>
    %36 = vector.multi_reduction <add>, %35, %cst_11 [1, 2] : vector<1x8x128xf32> to vector<1xf32>
    %37 = vector.shape_cast %36 : vector<1xf32> to vector<1x1x1xf32>
    %38 = vector.extract %37[0, 0, 0] : f32 from vector<1x1x1xf32>
    %cst_12 = arith.constant 1.024000e+03 : f32
    %39 = arith.divf %38, %cst_12 : f32
    %40 = arith.addf %25, %39 : f32
    %cst_13 = arith.constant 5.000000e-01 : f32
    %41 = arith.mulf %40, %cst_13 : f32
    %c0_14 = arith.constant 0 : index
    %42 = memref.load %arg1[%c0_14] : memref<3xf32, #tpu.memory_space<smem>>
    memref.store %11, %arg1[%c0_14] : memref<3xf32, #tpu.memory_space<smem>>
    %c1 = arith.constant 1 : index
    %43 = memref.load %arg1[%c1] : memref<3xf32, #tpu.memory_space<smem>>
    memref.store %41, %arg1[%c1] : memref<3xf32, #tpu.memory_space<smem>>
    %44 = arith.addf %11, %41 : f32
    %c2 = arith.constant 2 : index
    %45 = memref.load %arg1[%c2] : memref<3xf32, #tpu.memory_space<smem>>
    memref.store %44, %arg1[%c2] : memref<3xf32, #tpu.memory_space<smem>>
    return
  }
}

</mosaic_0001>

<llo_original>
// kernel: tpu_custom_call.1
$region0: #{tpu_custom_call.1}
  #allocation0 [shape = 'u32[]', space=smem, size = 0x4, offset = 0x4, fixed_abs, tag = 'smem constant byte address 0x4 - core index']
  #allocation1 [shape = 'u32[144,128]{1,0:T(1,128)}', space=vmem, size = 0x12000, scoped, tag = 'internal scratch']
  %s0 = inlined_call_operand.hbm [shape: f32[24,128], index: 0, kind: input, shape index: {}]
  %s1 = inlined_call_operand.hbm [shape: f32[3], index: 1, kind: output, shape index: {}]
  %s2 = sld [smem:[#allocation0]]
  $region18: #{tpu_custom_call.1} parent=0
    _
  %s4 = ssub.s32 1, %s2
  %s5 = scalar_select 0, %s4, %s2
  $region1: #{tpu_custom_call.1} parent=0
    #allocation2 [shape = 'u8[12288]{0}', space=vmem, size = 0x3000, scoped, tag = 'input window, operand 0, single buffered']
    #allocation3 [shape = 's32[1]{0}', space=sflag, size = 0x4, scoped, tag = 'scoped memory for tpu_custom_call.1']
    #allocation4 [shape = 's32[1]{0}', space=sflag, size = 0x4, scoped, tag = 'scoped memory for tpu_custom_call.1']
    #allocation5 [shape = 'u8[512]{0}', space=smem, size = 0x200, scoped, tag = 'output window, operand 0, single buffered']
    %6 = vsyncpa [#allocation3], 0
    %7 = vsyncpa [#allocation4], 0
    // Predicated region
    $region2: #{tpu_custom_call.1} parent=1 // pred_check
      _
    $region3: #{tpu_custom_call.1} parent=1 // pred_check_branch
      %9 = sbr.rel (0) target = $region5
    $region4: #{tpu_custom_call.1} parent=1 // pred_region
      %s11 = ssub.s32 384, 384
      %12 = vsyncadd [#allocation3], %s11
      %s13 = sshll.u32 [#allocation2], 4
      %s14 = int_to_ptr.vmem [resolvable:$true] %s13
      %19 = dma.hbm_to_vmem [thread:$0]  %s0, 384, %s14, [#allocation3], 128, 128, 8
    $region5: #{tpu_custom_call.1} parent=1 // pred_fallthru
      _
    // Predicated region
    $region6: #{tpu_custom_call.1} parent=1 // pred_check
      _
    $region7: #{tpu_custom_call.1} parent=1 // pred_check_branch
      %21 = sbr.rel (0) target = $region9
    $region8: #{tpu_custom_call.1} parent=1 // pred_region
      %22 = dma.done [#allocation3], 384
    $region9: #{tpu_custom_call.1} parent=1 // pred_fallthru
      _
    %v23 = vld [vmem:[#allocation2] sm:$0xff]
    %v24 = vld [vmem:[#allocation2 + $0x8] sm:$0xff]
    %v25 = vld [vmem:[#allocation2 + $0x10] sm:$0xff]
    %v26 = vsub.f32 %v23, %v24
    %v27 = vmul.f32 %v26, %v26
    %28 = vadd.xlane.f32.xlu0 %v27
    %v29 = vpop.xlane.xlu0 %28
    %v30 = vrot.slane %v29, 4
    %v31 = vadd.f32 %v29, %v30
    %v32 = vrot.slane %v31, 2
    %v33 = vadd.f32 %v31, %v32
    %v34 = vrot.slane %v33, 1
    %v35 = vadd.f32 %v33, %v34
    %s36 = vtos %v35
    %v37 = vrcp.pop 1024.0
    %s38 = vtos %v37
    %s39 = smul.f32 %s36, %s38
    %v40 = vmul.f32 %v24, %v25
    %v41 = vrot.slane %v40, 4
    %v42 = vadd.f32 %v40, %v41
    %v43 = vrot.slane %v42, 2
    %v44 = vadd.f32 %v42, %v43
    %v45 = vrot.slane %v44, 1
    %v46 = vadd.f32 %v44, %v45
    %v47 = vsub.f32 %v24, %v46
    %v48 = vsub.f32 0.0, %v47
    %v49 = vmax.f32 %v48, 0.0
    %50 = vadd.xlane.f32.xlu0 %v49
    %v51 = vpop.xlane.xlu0 %50
    %v52 = vrot.slane %v51, 4
    %v53 = vadd.f32 %v51, %v52
    %v54 = vrot.slane %v53, 2
    %v55 = vadd.f32 %v53, %v54
    %v56 = vrot.slane %v55, 1
    %v57 = vadd.f32 %v55, %v56
    %s58 = vtos %v57
    %v59 = vrcp.pop 1024.0
    %s60 = vtos %v59
    %s61 = smul.f32 %s58, %s60
    %v62 = vmul.f32 %v23, %v25
    %v63 = vrot.slane %v62, 4
    %v64 = vadd.f32 %v62, %v63
    %v65 = vrot.slane %v64, 2
    %v66 = vadd.f32 %v64, %v65
    %v67 = vrot.slane %v66, 1
    %v68 = vadd.f32 %v66, %v67
    %v69 = vsub.f32 %v23, %v68
    %v70 = vsub.f32 0.0, %v69
    %v71 = vmax.f32 %v70, 0.0
    %72 = vadd.xlane.f32.xlu0 %v71
    %v73 = vpop.xlane.xlu0 %72
    %v74 = vrot.slane %v73, 4
    %v75 = vadd.f32 %v73, %v74
    %v76 = vrot.slane %v75, 2
    %v77 = vadd.f32 %v75, %v76
    %v78 = vrot.slane %v77, 1
    %v79 = vadd.f32 %v77, %v78
    %s80 = vtos %v79
    %v81 = vrcp.pop 1024.0
    %s82 = vtos %v81
    %s83 = smul.f32 %s80, %s82
    %s84 = sadd.f32 %s61, %s83
    %s85 = smul.f32 %s84, 0.5
    %s86 = scalar_lea.smem [#allocation5], 0
    %87 = sst [smem:[%s86]] %s39
    %s88 = scalar_lea.smem [#allocation5], 1
    %89 = sst [smem:[%s88]] %s85
    %s90 = sadd.f32 %s39, %s85
    %s91 = scalar_lea.smem [#allocation5], 2
    %92 = sst [smem:[%s91]] %s90
    // Predicated region
    $region10: #{tpu_custom_call.1} parent=1 // pred_check
      _
    $region11: #{tpu_custom_call.1} parent=1 // pred_check_branch
      %94 = sbr.rel (0) target = $region13
    $region12: #{tpu_custom_call.1} parent=1 // pred_region
      %s96 = ssub.s32 16, 16
      %97 = vsyncadd [#allocation4], %s96
      %100 = dma.smem_to_hbm [#allocation5], 16, %s1, [#allocation4]
    $region13: #{tpu_custom_call.1} parent=1 // pred_fallthru
      _
    // Predicated region
    $region14: #{tpu_custom_call.1} parent=1 // pred_check
      _
    $region15: #{tpu_custom_call.1} parent=1 // pred_check_branch
      %102 = sbr.rel (0) target = $region17
    $region16: #{tpu_custom_call.1} parent=1 // pred_region
      %103 = dma.done [#allocation4], 16
    $region17: #{tpu_custom_call.1} parent=1 // pred_fallthru
      _
    %104 = sfence
    %105 = vsyncpa [#allocation3], 1
    %106 = vsyncpa [#allocation4], 1

</llo_original>
